<compile_context>
chip_gen: v7x
topology: tpu7x:2x2x1
jax: 0.10.0
libtpu: 0.0.40
codegen_flags: <defaults>
</compile_context>

<pallas_src>
import functools

import jax
import jax.numpy as jnp
from jax.experimental import pallas as pl
from jax.experimental.pallas import tpu as pltpu


def _round_up(v, m):
    return ((v + m - 1) // m) * m


def _cdiv(a, b):
    return -(-a // b)


def _tile_config(in_feature, out_feature, pool_size, max_tk=2048):
    """Tile sizes / padded extents (lane & sublane aligned).  Shared by the
    one-time weight repack and the forward wrapper — must stay consistent."""
    # Output-column tile: 256 wide unless out_feature is small enough that 128
    # already covers it (avoids doubling padding waste for tiny layers).
    tn = 256 if _round_up(out_feature, 128) > 128 else 128
    out_f_pad = _round_up(out_feature, tn)

    # K tile: as large as possible (fewer accumulator RMW passes / per-step
    # overheads), capped so the bf16 packed-weight tile stays <= ~8 MiB.
    in_f_pad = _round_up(in_feature, 128)
    tk_cap = max(128, max_tk)
    while tk_cap > 512 and tk_cap * pool_size * tn * 2 > (8 << 20):
        tk_cap //= 2
    if in_f_pad <= tk_cap:
        tk = in_f_pad
    else:
        n_kt = _cdiv(in_f_pad, tk_cap)
        tk = _round_up(_cdiv(in_f_pad, n_kt), 128)
        in_f_pad = tk * n_kt
    return tk, tn, in_f_pad, out_f_pad


def _maxout_kernel_single(x_ref, w_ref, b_ref, o_ref, *, pool_size, tn):
    # Single-K specialization: no scratch, no pl.when.  One wide MXU matmul,
    # then bias-add + pool-max streamed per lane-aligned slice into o_ref.
    y = jnp.dot(x_ref[...].astype(jnp.bfloat16), w_ref[0],
                preferred_element_type=jnp.float32)
    m = y[:, 0:tn] + b_ref[0, :, 0:tn]
    for p in range(1, pool_size):
        s = p * tn
        m = jnp.maximum(m, y[:, s:s + tn] + b_ref[0, :, s:s + tn])
    o_ref[...] = m.astype(o_ref.dtype)


def _maxout_kernel_acc(x_ref, w_ref, b_ref, o_ref, acc_ref, *, pool_size, tn):
    # Multi-K path: f32 accumulator persists over the innermost K grid axis.
    k = pl.program_id(2)

    @pl.when(k == 0)
    def _():
        # Fold the bias into the accumulator init: the init write happens
        # anyway, and this removes the bias add/load from the epilogue.
        acc_ref[...] = jnp.broadcast_to(b_ref[0], acc_ref.shape)

    acc_ref[...] += jnp.dot(x_ref[...].astype(jnp.bfloat16), w_ref[0],
                            preferred_element_type=jnp.float32)

    @pl.when(k == pl.num_programs(2) - 1)
    def _():
        # Stream per-pool slices straight from the scratch ref; never
        # materialize the full (tm, pool*tn) f32 value (vreg pressure/spills).
        m = acc_ref[:, 0:tn]
        for p in range(1, pool_size):
            m = jnp.maximum(m, acc_ref[:, p * tn:(p + 1) * tn])
        o_ref[...] = m.astype(o_ref.dtype)


def pack_maxout_params(weight, bias, *, out_feature, pool_size, max_tk=2048):
    """One-time repack of nn.Linear(in_f, out_f*pool) parameters.
    PyTorch layout: weight (out_f*pool, in_f), bias (out_f*pool,).  Row j of
    `weight` maps to (o, p) with j = o*pool + p, matching view(-1, out_f, pool).
    Do this once at load time, not per forward step."""
    out_fp, in_feature = weight.shape
    assert out_fp == out_feature * pool_size
    tk, tn, in_f_pad, out_f_pad = _tile_config(in_feature, out_feature,
                                               pool_size, max_tk)
    n_ct = out_f_pad // tn

    w = weight.reshape(out_feature, pool_size, in_feature)            # [o, p, k]
    w = jnp.pad(w, ((0, out_f_pad - out_feature), (0, 0),
                    (0, in_f_pad - in_feature)))
    w = w.reshape(n_ct, tn, pool_size, in_f_pad)                      # [j, c, p, k]
    w_packed = (w.transpose(0, 3, 2, 1)                               # [j, k, p, c]
                 .reshape(n_ct, in_f_pad, pool_size * tn)
                 .astype(jnp.bfloat16))                               # bf16 for MXU

    b = bias.reshape(out_feature, pool_size)                          # [o, p]
    b = jnp.pad(b, ((0, out_f_pad - out_feature), (0, 0)))
    b_packed = (b.reshape(n_ct, tn, pool_size)                        # [j, c, p]
                 .transpose(0, 2, 1)                                  # [j, p, c]
                 .reshape(n_ct, 1, pool_size * tn)
                 .astype(jnp.float32))                                # bias stays f32
    return w_packed, b_packed


def maxout_forward(x, w_packed, b_packed, *, in_feature, out_feature,
                   pool_size, tm=512, max_tk=2048, out_dtype=jnp.float32):
    """x: (N, in_feature).  Returns (N, out_feature) in out_dtype (default f32)."""
    n, in_f = x.shape
    assert in_f == in_feature
    tk, tn, in_f_pad, out_f_pad = _tile_config(in_feature, out_feature,
                                               pool_size, max_tk)
    n_ct = out_f_pad // tn
    n_kt = in_f_pad // tk
    assert w_packed.shape == (n_ct, in_f_pad, pool_size * tn), w_packed.shape
    assert b_packed.shape == (n_ct, 1, pool_size * tn), b_packed.shape

    # x is re-streamed once per output-column tile.  Pre-cast to bf16 in the
    # wrapper only when that happens often; otherwise stream f32 and cast the
    # tile inside the kernel (avoids a separate HBM cast pass over x).
    cast_in_wrapper = n_ct > 2
    x_bytes = 2 if cast_in_wrapper else x.dtype.itemsize

    def shrink(t):
        return max(16, _round_up(t // 2, 16))

    # Large row tile by default: packed-weight HBM traffic scales with N/tm.
    tm = max(16, _round_up(min(tm, _round_up(n, 16)), 16))

    def footprint(tm_):
        return (2 * tm_ * tk * x_bytes                 # x tile (double-buffered)
                + 2 * tk * pool_size * tn * 2          # packed weight (bf16, x2)
                + 2 * pool_size * tn * 4               # bias (x2)
                + tm_ * pool_size * tn * 4             # accumulator / dot result
                + 2 * tm_ * tn * 4)                    # output tile (x2)

    vmem_budget = 32 << 20                             # safe on v5e/v6e/v7x
    while footprint(tm) > vmem_budget and tm > 16:
        tm = shrink(tm)

    # v7x: 2 TensorCores shard the "parallel" grid axes; avoid a 1-tile grid.
    while (_round_up(n, tm) // tm) * n_ct < 2 and tm >= 32:
        tm = shrink(tm)

    n_pad = _round_up(n, tm)
    x_pad = x
    if (n_pad, in_f_pad) != (n, in_feature):
        x_pad = jnp.pad(x, ((0, n_pad - n), (0, in_f_pad - in_feature)))
    if cast_in_wrapper:
        x_pad = x_pad.astype(jnp.bfloat16)

    # Explicit scoped-VMEM limit: v5e defaults to 16 MiB; stay well under the
    # 64 MiB physical VMEM of v7x.
    vmem_limit = min(int(1.4 * footprint(tm)) + (4 << 20), 48 << 20)

    if n_kt == 1:
        kernel = functools.partial(_maxout_kernel_single,
                                   pool_size=pool_size, tn=tn)
        grid = (n_pad // tm, n_ct)
        in_specs = [
            pl.BlockSpec((tm, tk), lambda i, j: (i, 0)),
            pl.BlockSpec((1, tk, pool_size * tn), lambda i, j: (j, 0, 0)),
            pl.BlockSpec((1, 1, pool_size * tn), lambda i, j: (j, 0, 0)),
        ]
        out_specs = pl.BlockSpec((tm, tn), lambda i, j: (i, j))
        scratch_shapes = []
        dim_sem = ("parallel", "parallel")
    else:
        kernel = functools.partial(_maxout_kernel_acc,
                                   pool_size=pool_size, tn=tn)
        grid = (n_pad // tm, n_ct, n_kt)
        in_specs = [
            pl.BlockSpec((tm, tk), lambda i, j, k: (i, k)),
            pl.BlockSpec((1, tk, pool_size * tn), lambda i, j, k: (j, k, 0)),
            pl.BlockSpec((1, 1, pool_size * tn), lambda i, j, k: (j, 0, 0)),
        ]
        out_specs = pl.BlockSpec((tm, tn), lambda i, j, k: (i, j))
        scratch_shapes = [pltpu.VMEM((tm, pool_size * tn), jnp.float32)]
        dim_sem = ("parallel", "parallel", "arbitrary")

    out_padded = pl.pallas_call(
        kernel,
        out_shape=jax.ShapeDtypeStruct((n_pad, out_f_pad), out_dtype),
        grid_spec=pltpu.PrefetchScalarGridSpec(
            num_scalar_prefetch=0,
            grid=grid,
            in_specs=in_specs,
            out_specs=out_specs,
            scratch_shapes=scratch_shapes,
        ),
        compiler_params=pltpu.CompilerParams(
            dimension_semantics=dim_sem,
            vmem_limit_bytes=vmem_limit,
        ),
    )(x_pad, w_packed, b_packed)

    return out_padded[:n, :out_feature]


if __name__ == "__main__":
    key = jax.random.PRNGKey(0)

    def run_case(n, in_feature, out_feature, pool_size, max_tk, case_key):
        kx, kw, kb = jax.random.split(case_key, 3)
        x = jax.random.normal(kx, (n, in_feature), dtype=jnp.float32)
        # Deterministic "nn.Linear"-style parameters (synthetic init).
        bound = 1.0 / (in_feature ** 0.5)
        weight = jax.random.uniform(
            kw, (out_feature * pool_size, in_feature),
            minval=-bound, maxval=bound, dtype=jnp.float32)
        bias = jax.random.uniform(
            kb, (out_feature * pool_size,),
            minval=-bound, maxval=bound, dtype=jnp.float32)

        # One-time parameter repack (hoisted out of the per-step forward).
        w_packed, b_packed = pack_maxout_params(
            weight, bias, out_feature=out_feature, pool_size=pool_size,
            max_tk=max_tk)

        out = maxout_forward(
            x, w_packed, b_packed, in_feature=in_feature,
            out_feature=out_feature, pool_size=pool_size, max_tk=max_tk)
        out = jax.block_until_ready(out)
        assert out.shape == (n, out_feature)

        # Reference of the PyTorch semantics with the same bf16 operand
        # rounding (kernel uses bf16 operands + f32 accumulation).
        xb = x.astype(jnp.bfloat16).astype(jnp.float32)
        wb = weight.astype(jnp.bfloat16).astype(jnp.float32)
        ref = (xb @ wb.T + bias).reshape(-1, out_feature, pool_size).max(axis=2)
        assert jnp.allclose(out, ref, atol=1e-4, rtol=1e-4), (
            float(jnp.max(jnp.abs(out - ref))))

        # Loose sanity check against the pure-f32 PyTorch reference.
        ref_f32 = (x @ weight.T + bias).reshape(
            -1, out_feature, pool_size).max(axis=2)
        assert jnp.allclose(out, ref_f32, atol=1e-1, rtol=1e-1)

    k1, k2 = jax.random.split(key)
    # Small shapes consistent with the module (single-K fast path, no scratch).
    run_case(n=16, in_feature=32, out_feature=16, pool_size=4,
             max_tk=2048, case_key=k1)
    # Also exercise the multi-K accumulator path (max_tk forced small for test).
    run_case(n=24, in_feature=256, out_feature=8, pool_size=2,
             max_tk=128, case_key=k2)

    print("KERNEL_OK")
</pallas_src>

<mosaic_0001>
module attributes {stable_mosaic.version = 11 : i64} {
  func.func @_maxout_kernel_single(%arg0: i32, %arg1: i32, %arg2: memref<16x128xf32, #tpu.memory_space<vmem>>, %arg3: memref<1x128x512xbf16, #tpu.memory_space<vmem>>, %arg4: memref<1x1x512xf32, #tpu.memory_space<vmem>>, %arg5: memref<16x128xf32, #tpu.memory_space<vmem>>) attributes {dimension_semantics = [#tpu.dimension_semantics<parallel>, #tpu.dimension_semantics<parallel>], iteration_bounds = array<i64: 1, 1>, scalar_prefetch = 0 : i64, scratch_operands = 0 : i64, tpu.core_type = #tpu.core_type<tc>, window_params = [{transform_indices = @transform_0, window_bounds = array<i64: 16, 128>}, {transform_indices = @transform_1, window_bounds = array<i64: 1, 128, 512>}, {transform_indices = @transform_2, window_bounds = array<i64: 1, 1, 512>}, {transform_indices = @transform_3, window_bounds = array<i64: 16, 128>}]} {
    %c0 = arith.constant 0 : index
    %c0_0 = arith.constant 0 : index
    %0 = vector.load %arg2[%c0, %c0_0] : memref<16x128xf32, #tpu.memory_space<vmem>>, vector<16x128xf32>
    %1 = arith.truncf %0 : vector<16x128xf32> to vector<16x128xbf16>
    %c0_1 = arith.constant 0 : index
    %c0_2 = arith.constant 0 : index
    %c0_3 = arith.constant 0 : index
    %2 = vector.load %arg3[%c0_1, %c0_2, %c0_3] : memref<1x128x512xbf16, #tpu.memory_space<vmem>>, vector<1x128x512xbf16>
    %3 = vector.shape_cast %2 : vector<1x128x512xbf16> to vector<128x512xbf16>
    %cst = arith.constant dense<0.000000e+00> : vector<16x512xf32>
    %4 = tpu.matmul %1, %3, %cst {dimension_numbers = #tpu.dot_dimension_numbers<[1], [0], [0], [1], [0, 0, 1, 1], [], []>} : vector<16x128xbf16>, vector<128x512xbf16>, vector<16x512xf32> -> vector<16x512xf32>
    %5 = vector.extract_strided_slice %4 {offsets = [0, 0], sizes = [16, 128], strides = [1, 1]} : vector<16x512xf32> to vector<16x128xf32>
    %c0_4 = arith.constant 0 : index
    %c0_5 = arith.constant 0 : index
    %c0_6 = arith.constant 0 : index
    %6 = vector.load %arg4[%c0_4, %c0_5, %c0_6] : memref<1x1x512xf32, #tpu.memory_space<vmem>>, vector<1x1x128xf32>
    %7 = vector.shape_cast %6 : vector<1x1x128xf32> to vector<1x128xf32>
    %8 = vector.broadcast %7 : vector<1x128xf32> to vector<16x128xf32>
    %9 = arith.addf %5, %8 : vector<16x128xf32>
    %10 = vector.extract_strided_slice %4 {offsets = [0, 128], sizes = [16, 128], strides = [1, 1]} : vector<16x512xf32> to vector<16x128xf32>
    %c0_7 = arith.constant 0 : index
    %c0_8 = arith.constant 0 : index
    %c128 = arith.constant 128 : index
    %11 = vector.load %arg4[%c0_7, %c0_8, %c128] : memref<1x1x512xf32, #tpu.memory_space<vmem>>, vector<1x1x128xf32>
    %12 = vector.shape_cast %11 : vector<1x1x128xf32> to vector<1x128xf32>
    %13 = vector.broadcast %12 : vector<1x128xf32> to vector<16x128xf32>
    %14 = arith.addf %10, %13 : vector<16x128xf32>
    %15 = arith.maximumf %9, %14 : vector<16x128xf32>
    %16 = vector.extract_strided_slice %4 {offsets = [0, 256], sizes = [16, 128], strides = [1, 1]} : vector<16x512xf32> to vector<16x128xf32>
    %c0_9 = arith.constant 0 : index
    %c0_10 = arith.constant 0 : index
    %c256 = arith.constant 256 : index
    %17 = vector.load %arg4[%c0_9, %c0_10, %c256] : memref<1x1x512xf32, #tpu.memory_space<vmem>>, vector<1x1x128xf32>
    %18 = vector.shape_cast %17 : vector<1x1x128xf32> to vector<1x128xf32>
    %19 = vector.broadcast %18 : vector<1x128xf32> to vector<16x128xf32>
    %20 = arith.addf %16, %19 : vector<16x128xf32>
    %21 = arith.maximumf %15, %20 : vector<16x128xf32>
    %22 = vector.extract_strided_slice %4 {offsets = [0, 384], sizes = [16, 128], strides = [1, 1]} : vector<16x512xf32> to vector<16x128xf32>
    %c0_11 = arith.constant 0 : index
    %c0_12 = arith.constant 0 : index
    %c384 = arith.constant 384 : index
    %23 = vector.load %arg4[%c0_11, %c0_12, %c384] : memref<1x1x512xf32, #tpu.memory_space<vmem>>, vector<1x1x128xf32>
    %24 = vector.shape_cast %23 : vector<1x1x128xf32> to vector<1x128xf32>
    %25 = vector.broadcast %24 : vector<1x128xf32> to vector<16x128xf32>
    %26 = arith.addf %22, %25 : vector<16x128xf32>
    %27 = arith.maximumf %21, %26 : vector<16x128xf32>
    %c0_13 = arith.constant 0 : index
    %c0_14 = arith.constant 0 : index
    %28 = vector.load %arg5[%c0_13, %c0_14] : memref<16x128xf32, #tpu.memory_space<vmem>>, vector<16x128xf32>
    tpu.vector_store %arg5[%c0_13, %c0_14], %27 {strides = array<i32>} : memref<16x128xf32, #tpu.memory_space<vmem>>, vector<16x128xf32>,
    return
  }
  func.func @transform_0(%arg0: i32, %arg1: i32) -> (i32, i32) {
    %c0_i32 = arith.constant 0 : i32
    %c0_i32_0 = arith.constant 0 : i32
    return %arg0, %c0_i32 : i32, i32
  }
  func.func @transform_1(%arg0: i32, %arg1: i32) -> (i32, i32, i32) {
    %c0_i32 = arith.constant 0 : i32
    %c0_i32_0 = arith.constant 0 : i32
    %c0_i32_1 = arith.constant 0 : i32
    return %arg1, %c0_i32, %c0_i32_0 : i32, i32, i32
  }
  func.func @transform_2(%arg0: i32, %arg1: i32) -> (i32, i32, i32) {
    %c0_i32 = arith.constant 0 : i32
    %c0_i32_0 = arith.constant 0 : i32
    %c0_i32_1 = arith.constant 0 : i32
    return %arg1, %c0_i32, %c0_i32_0 : i32, i32, i32
  }
  func.func @transform_3(%arg0: i32, %arg1: i32) -> (i32, i32) {
    %c0_i32 = arith.constant 0 : i32
    return %arg0, %arg1 : i32, i32
  }
}

</mosaic_0001>

<llo_original>
// kernel: tpu_custom_call.1
$region0: #{tpu_custom_call.1}
  #allocation0 [shape = 'u32[]', space=smem, size = 0x4, offset = 0x4, fixed_abs, tag = 'smem constant byte address 0x4 - core index']
  #allocation1 [shape = 'u32[144,128]{1,0:T(1,128)}', space=vmem, size = 0x12000, scoped, tag = 'internal scratch']
  %s0 = inlined_call_operand.hbm [shape: f32[16,128], index: 0, kind: input, shape index: {}]
  %s1 = inlined_call_operand.hbm [shape: bf16[1,128,512], index: 1, kind: input, shape index: {}]
  %s2 = inlined_call_operand.vmem [shape: f32[1,1,512], index: 2, kind: input, shape index: {}]
  %s3 = inlined_call_operand.hbm [shape: f32[16,128], index: 3, kind: output, shape index: {}]
  %s4 = sld [smem:[#allocation0]]
  $region30: #{tpu_custom_call.1} parent=0
    _
  %s6 = ssub.s32 1, %s4
  %s7 = scalar_select 0, %s6, %s4
  $region1: #{tpu_custom_call.1} parent=0
    #allocation2 [shape = 'u8[8192]{0}', space=vmem, size = 0x2000, scoped, tag = 'input window, operand 0, single buffered']
    #allocation3 [shape = 's32[1]{0}', space=sflag, size = 0x4, scoped, tag = 'scoped memory for tpu_custom_call.1']
    #allocation4 [shape = 's32[1]{0}', space=sflag, size = 0x4, scoped, tag = 'scoped memory for tpu_custom_call.1']
    #allocation5 [shape = 'u8[131072]{0}', space=vmem, size = 0x20000, scoped, tag = 'input window, operand 1, single buffered']
    #allocation6 [shape = 's32[1]{0}', space=sflag, size = 0x4, scoped, tag = 'scoped memory for tpu_custom_call.1']
    #allocation7 [shape = 'u8[8192]{0}', space=vmem, size = 0x2000, scoped, tag = 'output window, operand 0, single buffered']
    %8 = vsyncpa [#allocation3], 0
    %9 = vsyncpa [#allocation6], 0
    %10 = vsyncpa [#allocation4], 0
    // Predicated region
    $region2: #{tpu_custom_call.1} parent=1 // pred_check
      _
    $region3: #{tpu_custom_call.1} parent=1 // pred_check_branch
      %12 = sbr.rel (0) target = $region5
    $region4: #{tpu_custom_call.1} parent=1 // pred_region
      %s14 = ssub.s32 256, 256
      %15 = vsyncadd [#allocation3], %s14
      %s16 = sshll.u32 [#allocation2], 4
      %s17 = int_to_ptr.vmem [resolvable:$true] %s16
      %22 = dma.hbm_to_vmem [thread:$0]  %s0, 256, %s17, [#allocation3], 128, 128, 8
    $region5: #{tpu_custom_call.1} parent=1 // pred_fallthru
      _
    // Predicated region
    $region6: #{tpu_custom_call.1} parent=1 // pred_check
      _
    $region7: #{tpu_custom_call.1} parent=1 // pred_check_branch
      %24 = sbr.rel (0) target = $region9
    $region8: #{tpu_custom_call.1} parent=1 // pred_region
      %s26 = ssub.s32 4096, 4096
      %27 = vsyncadd [#allocation6], %s26
      %s28 = sshll.u32 [#allocation5], 4
      %s29 = int_to_ptr.vmem [resolvable:$true] %s28
      %34 = dma.hbm_to_vmem [thread:$0]  %s1, 4096, %s29, [#allocation6], 256, 256, 16
    $region9: #{tpu_custom_call.1} parent=1 // pred_fallthru
      _
    // Predicated region
    $region10: #{tpu_custom_call.1} parent=1 // pred_check
      _
    $region11: #{tpu_custom_call.1} parent=1 // pred_check_branch
      %36 = sbr.rel (0) target = $region13
    $region12: #{tpu_custom_call.1} parent=1 // pred_region
      _
    $region13: #{tpu_custom_call.1} parent=1 // pred_fallthru
      _
    // Predicated region
    $region14: #{tpu_custom_call.1} parent=1 // pred_check
      _
    $region15: #{tpu_custom_call.1} parent=1 // pred_check_branch
      %38 = sbr.rel (0) target = $region17
    $region16: #{tpu_custom_call.1} parent=1 // pred_region
      %39 = dma.done [#allocation3], 256
    $region17: #{tpu_custom_call.1} parent=1 // pred_fallthru
      _
    // Predicated region
    $region18: #{tpu_custom_call.1} parent=1 // pred_check
      _
    $region19: #{tpu_custom_call.1} parent=1 // pred_check_branch
      %41 = sbr.rel (0) target = $region21
    $region20: #{tpu_custom_call.1} parent=1 // pred_region
      %42 = dma.done [#allocation6], 4096
    $region21: #{tpu_custom_call.1} parent=1 // pred_fallthru
      _
    %v44 = vld [vmem:[#allocation2] sm:$0xff]
    %v45 = vld [vmem:[#allocation2 + $0x8] sm:$0xff]
    %v46 = vpack.c.bf16 %v45, %v44
    %v47 = vld [vmem:[#allocation5] sm:$0xff]
    %v48 = vld [vmem:[#allocation5 + $0x8] sm:$0xff]
    %v49 = vld [vmem:[#allocation5 + $0x10] sm:$0xff]
    %v50 = vld [vmem:[#allocation5 + $0x18] sm:$0xff]
    %v51 = vld [vmem:[#allocation5 + $0x20] sm:$0xff]
    %v52 = vld [vmem:[#allocation5 + $0x28] sm:$0xff]
    %v53 = vld [vmem:[#allocation5 + $0x30] sm:$0xff]
    %v54 = vld [vmem:[#allocation5 + $0x38] sm:$0xff]
    %v55 = vld [vmem:[#allocation5 + $0x40] sm:$0xff]
    %v56 = vld [vmem:[#allocation5 + $0x48] sm:$0xff]
    %v57 = vld [vmem:[#allocation5 + $0x50] sm:$0xff]
    %v58 = vld [vmem:[#allocation5 + $0x58] sm:$0xff]
    %v59 = vld [vmem:[#allocation5 + $0x60] sm:$0xff]
    %v60 = vld [vmem:[#allocation5 + $0x68] sm:$0xff]
    %v61 = vld [vmem:[#allocation5 + $0x70] sm:$0xff]
    %v62 = vld [vmem:[#allocation5 + $0x78] sm:$0xff]
    %v63 = vld [vmem:[#allocation5 + $0x80] sm:$0xff]
    %v64 = vld [vmem:[#allocation5 + $0x88] sm:$0xff]
    %v65 = vld [vmem:[#allocation5 + $0x90] sm:$0xff]
    %v66 = vld [vmem:[#allocation5 + $0x98] sm:$0xff]
    %v67 = vld [vmem:[#allocation5 + $0xa0] sm:$0xff]
    %v68 = vld [vmem:[#allocation5 + $0xa8] sm:$0xff]
    %v69 = vld [vmem:[#allocation5 + $0xb0] sm:$0xff]
    %v70 = vld [vmem:[#allocation5 + $0xb8] sm:$0xff]
    %v71 = vld [vmem:[#allocation5 + $0xc0] sm:$0xff]
    %v72 = vld [vmem:[#allocation5 + $0xc8] sm:$0xff]
    %v73 = vld [vmem:[#allocation5 + $0xd0] sm:$0xff]
    %v74 = vld [vmem:[#allocation5 + $0xd8] sm:$0xff]
    %v75 = vld [vmem:[#allocation5 + $0xe0] sm:$0xff]
    %v76 = vld [vmem:[#allocation5 + $0xe8] sm:$0xff]
    %v77 = vld [vmem:[#allocation5 + $0xf0] sm:$0xff]
    %v78 = vld [vmem:[#allocation5 + $0xf8] sm:$0xff]
    %v111 = vunpack.c.l.b16 %v47
    %v112 = vunpack.c.h.b16 %v47
    %v113 = vunpack.c.l.b16 %v48
    %v114 = vunpack.c.h.b16 %v48
    %v115 = vunpack.c.l.b16 %v49
    %v116 = vunpack.c.h.b16 %v49
    %v117 = vunpack.c.l.b16 %v50
    %v118 = vunpack.c.h.b16 %v50
    %v119 = vunpack.c.l.b16 %v51
    %v120 = vunpack.c.h.b16 %v51
    %v121 = vunpack.c.l.b16 %v52
    %v122 = vunpack.c.h.b16 %v52
    %v123 = vunpack.c.l.b16 %v53
    %v124 = vunpack.c.h.b16 %v53
    %v125 = vunpack.c.l.b16 %v54
    %v126 = vunpack.c.h.b16 %v54
    %v127 = vunpack.c.l.b16 %v55
    %v128 = vunpack.c.h.b16 %v55
    %v129 = vunpack.c.l.b16 %v56
    %v130 = vunpack.c.h.b16 %v56
    %v131 = vunpack.c.l.b16 %v57
    %v132 = vunpack.c.h.b16 %v57
    %v133 = vunpack.c.l.b16 %v58
    %v134 = vunpack.c.h.b16 %v58
    %v135 = vunpack.c.l.b16 %v59
    %v136 = vunpack.c.h.b16 %v59
    %v137 = vunpack.c.l.b16 %v60
    %v138 = vunpack.c.h.b16 %v60
    %v139 = vunpack.c.l.b16 %v61
    %v140 = vunpack.c.h.b16 %v61
    %v141 = vunpack.c.l.b16 %v62
    %v142 = vunpack.c.h.b16 %v62
    %v143 = vunpack.c.l.b16 %v63
    %v144 = vunpack.c.h.b16 %v63
    %v145 = vunpack.c.l.b16 %v64
    %v146 = vunpack.c.h.b16 %v64
    %v147 = vunpack.c.l.b16 %v65
    %v148 = vunpack.c.h.b16 %v65
    %v149 = vunpack.c.l.b16 %v66
    %v150 = vunpack.c.h.b16 %v66
    %v151 = vunpack.c.l.b16 %v67
    %v152 = vunpack.c.h.b16 %v67
    %v153 = vunpack.c.l.b16 %v68
    %v154 = vunpack.c.h.b16 %v68
    %v155 = vunpack.c.l.b16 %v69
    %v156 = vunpack.c.h.b16 %v69
    %v157 = vunpack.c.l.b16 %v70
    %v158 = vunpack.c.h.b16 %v70
    %v159 = vunpack.c.l.b16 %v71
    %v160 = vunpack.c.h.b16 %v71
    %v161 = vunpack.c.l.b16 %v72
    %v162 = vunpack.c.h.b16 %v72
    %v163 = vunpack.c.l.b16 %v73
    %v164 = vunpack.c.h.b16 %v73
    %v165 = vunpack.c.l.b16 %v74
    %v166 = vunpack.c.h.b16 %v74
    %v167 = vunpack.c.l.b16 %v75
    %v168 = vunpack.c.h.b16 %v75
    %v169 = vunpack.c.l.b16 %v76
    %v170 = vunpack.c.h.b16 %v76
    %v171 = vunpack.c.l.b16 %v77
    %v172 = vunpack.c.h.b16 %v77
    %v173 = vunpack.c.l.b16 %v78
    %v174 = vunpack.c.h.b16 %v78
    %v175 = vpack.c.b16 %v115, %v111
    %v176 = vpack.c.b16 %v116, %v112
    %v177 = vpack.c.b16 %v117, %v113
    %v178 = vpack.c.b16 %v118, %v114
    %v179 = vpack.c.b16 %v123, %v119
    %v180 = vpack.c.b16 %v124, %v120
    %v181 = vpack.c.b16 %v125, %v121
    %v182 = vpack.c.b16 %v126, %v122
    %v183 = vpack.c.b16 %v131, %v127
    %v184 = vpack.c.b16 %v132, %v128
    %v185 = vpack.c.b16 %v133, %v129
    %v186 = vpack.c.b16 %v134, %v130
    %v187 = vpack.c.b16 %v139, %v135
    %v188 = vpack.c.b16 %v140, %v136
    %v189 = vpack.c.b16 %v141, %v137
    %v190 = vpack.c.b16 %v142, %v138
    %v191 = vpack.c.b16 %v147, %v143
    %v192 = vpack.c.b16 %v148, %v144
    %v193 = vpack.c.b16 %v149, %v145
    %v194 = vpack.c.b16 %v150, %v146
    %v195 = vpack.c.b16 %v155, %v151
    %v196 = vpack.c.b16 %v156, %v152
    %v197 = vpack.c.b16 %v157, %v153
    %v198 = vpack.c.b16 %v158, %v154
    %v199 = vpack.c.b16 %v163, %v159
    %v200 = vpack.c.b16 %v164, %v160
    %v201 = vpack.c.b16 %v165, %v161
    %v202 = vpack.c.b16 %v166, %v162
    %v203 = vpack.c.b16 %v171, %v167
    %v204 = vpack.c.b16 %v172, %v168
    %v205 = vpack.c.b16 %v173, %v169
    %v206 = vpack.c.b16 %v174, %v170
    %239 = vmatprep.subr.bf16.mxu0 %v176
    %240 = vmatpush1.bf16.msra.mxu0 %v175
    %241 = vmatprep.subr.bf16.mxu0 %v180
    %242 = vmatpush1.bf16.msra.mxu0 %v179
    %243 = vmatprep.subr.bf16.mxu0 %v184
    %244 = vmatpush1.bf16.msra.mxu0 %v183
    %245 = vmatprep.subr.bf16.mxu0 %v188
    %246 = vmatpush1.bf16.msra.mxu0 %v187
    %247 = vmatprep.subr.bf16.mxu0 %v192
    %248 = vmatpush1.bf16.msra.mxu0 %v191
    %249 = vmatprep.subr.bf16.mxu0 %v196
    %250 = vmatpush1.bf16.msra.mxu0 %v195
    %251 = vmatprep.subr.bf16.mxu0 %v200
    %252 = vmatpush1.bf16.msra.mxu0 %v199
    %253 = vmatprep.subr.bf16.mxu0 %v204
    %254 = vmatpush1.bf16.msra.mxu0 %v203
    %255 = vmatprep.subr.bf16.mxu0 0
    %256 = vmatpush1.bf16.msra.mxu0 0
    %257 = vmatprep.subr.bf16.mxu0 0
    %258 = vmatpush1.bf16.msra.mxu0 0
    %259 = vmatprep.subr.bf16.mxu0 0
    %260 = vmatpush1.bf16.msra.mxu0 0
    %261 = vmatprep.subr.bf16.mxu0 0
    %262 = vmatpush1.bf16.msra.mxu0 0
    %263 = vmatprep.subr.bf16.mxu0 0
    %264 = vmatpush1.bf16.msra.mxu0 0
    %265 = vmatprep.subr.bf16.mxu0 0
    %266 = vmatpush1.bf16.msra.mxu0 0
    %267 = vmatprep.subr.bf16.mxu0 0
    %268 = vmatpush1.bf16.msra.mxu0 0
    %269 = vmatprep.subr.bf16.mxu0 0
    %270 = vmatpush1.bf16.msra.mxu0 0
    %271 = vmatprep.mubr.bf16.mxu0 0
    %272 = vmatmul.mubr.bf16.gmra.mrb[0].mxu0 %v46
    %v273 = vpop.f32.mrb[0].mxu0
    %v274 = vadd.f32 0.0, %v273
    %v275 = vpop.f32.mrb[0].mxu0
    %v276 = vadd.f32 0.0, %v275
    %v277 = vpop.f32.mrb[0].mxu0
    %v278 = vadd.f32 0.0, %v277
    %v279 = vpop.f32.mrb[0].mxu0
    %v280 = vadd.f32 0.0, %v279
    %281 = vdwg.mxu0
    %282 = vmatprep.subr.bf16.mxu0 %v178
    %283 = vmatpush1.bf16.msra.mxu0 %v177
    %284 = vmatprep.subr.bf16.mxu0 %v182
    %285 = vmatpush1.bf16.msra.mxu0 %v181
    %286 = vmatprep.subr.bf16.mxu0 %v186
    %287 = vmatpush1.bf16.msra.mxu0 %v185
    %288 = vmatprep.subr.bf16.mxu0 %v190
    %289 = vmatpush1.bf16.msra.mxu0 %v189
    %290 = vmatprep.subr.bf16.mxu0 %v194
    %291 = vmatpush1.bf16.msra.mxu0 %v193
    %292 = vmatprep.subr.bf16.mxu0 %v198
    %293 = vmatpush1.bf16.msra.mxu0 %v197
    %294 = vmatprep.subr.bf16.mxu0 %v202
    %295 = vmatpush1.bf16.msra.mxu0 %v201
    %296 = vmatprep.subr.bf16.mxu0 %v206
    %297 = vmatpush1.bf16.msra.mxu0 %v205
    %298 = vmatprep.subr.bf16.mxu0 0
    %299 = vmatpush1.bf16.msra.mxu0 0
    %300 = vmatprep.subr.bf16.mxu0 0
    %301 = vmatpush1.bf16.msra.mxu0 0
    %302 = vmatprep.subr.bf16.mxu0 0
    %303 = vmatpush1.bf16.msra.mxu0 0
    %304 = vmatprep.subr.bf16.mxu0 0
    %305 = vmatpush1.bf16.msra.mxu0 0
    %306 = vmatprep.subr.bf16.mxu0 0
    %307 = vmatpush1.bf16.msra.mxu0 0
    %308 = vmatprep.subr.bf16.mxu0 0
    %309 = vmatpush1.bf16.msra.mxu0 0
    %310 = vmatprep.subr.bf16.mxu0 0
    %311 = vmatpush1.bf16.msra.mxu0 0
    %312 = vmatprep.subr.bf16.mxu0 0
    %313 = vmatpush1.bf16.msra.mxu0 0
    %314 = vmatprep.mubr.bf16.mxu0 0
    %315 = vmatmul.mubr.bf16.gmra.mrb[0].mxu0 %v46
    %v316 = vpop.f32.mrb[0].mxu0
    %v317 = vadd.f32 0.0, %v316
    %v318 = vpop.f32.mrb[0].mxu0
    %v319 = vadd.f32 0.0, %v318
    %v320 = vpop.f32.mrb[0].mxu0
    %v321 = vadd.f32 0.0, %v320
    %v322 = vpop.f32.mrb[0].mxu0
    %v323 = vadd.f32 0.0, %v322
    %324 = vdwg.mxu0
    %v325 = vld [vmem:[%s2] sm:$0x1]
    %v327 = vlaneseq
    %v328 = vshrl.u32 %v327, 7
    %v329 = vsub.s32 0, %v328
    %v330 = vrot.slane %v325, %v329
    %v332 = vadd.f32 %v274, %v330
    %v333 = vadd.f32 %v278, %v330
    %v334 = vld [vmem:[%s2 + $0x1] sm:$0x1]
    %v336 = vlaneseq
    %v337 = vshrl.u32 %v336, 7
    %v338 = vsub.s32 0, %v337
    %v339 = vrot.slane %v334, %v338
    %v341 = vadd.f32 %v276, %v339
    %v342 = vadd.f32 %v280, %v339
    %v343 = vmax.f32 %v332, %v341
    %v344 = vmax.f32 %v333, %v342
    %v345 = vld [vmem:[%s2 + $0x2] sm:$0x1]
    %v347 = vlaneseq
    %v348 = vshrl.u32 %v347, 7
    %v349 = vsub.s32 0, %v348
    %v350 = vrot.slane %v345, %v349
    %v352 = vadd.f32 %v317, %v350
    %v353 = vadd.f32 %v321, %v350
    %v354 = vmax.f32 %v343, %v352
    %v355 = vmax.f32 %v344, %v353
    %v356 = vld [vmem:[%s2 + $0x3] sm:$0x1]
    %v358 = vlaneseq
    %v359 = vshrl.u32 %v358, 7
    %v360 = vsub.s32 0, %v359
    %v361 = vrot.slane %v356, %v360
    %v363 = vadd.f32 %v319, %v361
    %v364 = vadd.f32 %v323, %v361
    %v365 = vmax.f32 %v354, %v363
    %v366 = vmax.f32 %v355, %v364
    %367 = vst [vmem:[#allocation7] sm:$0xff] %v365
    %368 = vst [vmem:[#allocation7 + $0x8] sm:$0xff] %v366
    // Predicated region
    $region22: #{tpu_custom_call.1} parent=1 // pred_check
      _
    $region23: #{tpu_custom_call.1} parent=1 // pred_check_branch
      %370 = sbr.rel (0) target = $region25
    $region24: #{tpu_custom_call.1} parent=1 // pred_region
      %s372 = ssub.s32 256, 256
      %373 = vsyncadd [#allocation4], %s372
      %s374 = sshll.u32 [#allocation7], 4
      %s375 = int_to_ptr.vmem [resolvable:$true] %s374
      %380 = dma.vmem_to_hbm [thread:$0]  %s375, 256, %s3, [#allocation4], 128, 128, 8
    $region25: #{tpu_custom_call.1} parent=1 // pred_fallthru
      _
    // Predicated region
    $region26: #{tpu_custom_call.1} parent=1 // pred_check
      _
    $region27: #{tpu_custom_call.1} parent=1 // pred_check_branch
      %382 = sbr.rel (0) target = $region29
    $region28: #{tpu_custom_call.1} parent=1 // pred_region
      %383 = dma.done [#allocation4], 256
    $region29: #{tpu_custom_call.1} parent=1 // pred_fallthru
      _
    %384 = vsyncpa [#allocation3], 1
    %385 = vsyncpa [#allocation6], 1
    %386 = vsyncpa [#allocation4], 1

</llo_original>
